<compile_context>
chip_gen: v6e
topology: v6e:2x2x1
jax: 0.10.0
libtpu: 0.0.40
codegen_flags: <defaults>
</compile_context>

<pallas_src>
import functools

import numpy as np
import jax
import jax.numpy as jnp
from jax import lax
from jax.experimental import pallas as pl
from jax.experimental.pallas import tpu as pltpu


def _round_up(x, m):
    return ((x + m - 1) // m) * m


# --------------------------------------------------------------------------
# Fused kernel: cluster stats -> means -> variance / distance / regularizer
# --------------------------------------------------------------------------
def _fused_kernel(c_ref,            # SMEM scalar prefetch: (N,) int32 cluster counts
                  x_ref,            # (1, E, TP)  f32 embeddings tile
                  lbl_ref,          # (1, 1, TP)  int32 labels tile (-1 = padding)
                  loss_ref,         # (1, 1, 1)   per-sample loss output
                  cm_ref,           # VMEM (C_pad, E): sums (phase 0) -> means (phase 1)
                  cnt_ref,          # VMEM (C_pad, 1): counts (phase 0) -> 1/count (phase 1)
                  mu2_ref,          # VMEM (C_pad, 1): ||mu_c||^2 (hoisted)
                  acc_ref,          # VMEM (1, 1):    variance-term accumulator
                  *, delta_var, delta_dist, alpha, beta, gamma, C_pad):
    b = pl.program_id(0)
    phase = pl.program_id(1)
    t = pl.program_id(2)
    last_t = pl.num_programs(2) - 1

    x = x_ref[0]                   # (E, TP)
    lbl = lbl_ref[0]               # (1, TP)
    TP = x.shape[1]

    # In-kernel one-hot: padded pixels (label = -1) and padded clusters give 0.
    cluster_ids = lax.broadcasted_iota(jnp.int32, (C_pad, TP), 0)
    oh = (cluster_ids == lbl).astype(jnp.float32)          # (C_pad, TP)

    # ---------------- phase 0: per-cluster sums + voxel counts ----------------
    @pl.when(jnp.logical_and(phase == 0, t == 0))
    def _():
        cm_ref[...] = jnp.zeros_like(cm_ref)
        cnt_ref[...] = jnp.zeros_like(cnt_ref)
        acc_ref[...] = jnp.zeros_like(acc_ref)

    @pl.when(phase == 0)
    def _():
        # (C_pad, TP) . (E, TP)^T -> (C_pad, E)
        cm_ref[...] += lax.dot_general(oh, x, (((1,), (1,)), ((), ())),
                                       preferred_element_type=jnp.float32)
        cnt_ref[...] += jnp.sum(oh, axis=1, keepdims=True)

    # -------- phase boundary: sums/counts -> means / 1/count / ||mu||^2 --------
    @pl.when(jnp.logical_and(phase == 1, t == 0))
    def _():
        # Padded clusters have count 0; safe divide gives mean 0 (masked later).
        invn = 1.0 / jnp.maximum(cnt_ref[...], 1.0)
        means = cm_ref[...] * invn
        cm_ref[...] = means
        cnt_ref[...] = invn
        mu2_ref[...] = jnp.sum(means * means, axis=1, keepdims=True)

    # ---------------- phase 1: variance ("pull") term ----------------
    @pl.when(phase == 1)
    def _():
        means = cm_ref[...]                                  # (C_pad, E)
        invn = cnt_ref[...]                                  # (C_pad, 1)
        mu2 = mu2_ref[...]                                   # (C_pad, 1)
        cross = jnp.dot(means, x, preferred_element_type=jnp.float32)  # (C_pad, TP)
        x2 = jnp.sum(x * x, axis=0, keepdims=True)           # (1, TP)
        # ||x_p - mu_c|| = sqrt(||mu_c||^2 + ||x_p||^2 - 2 mu_c.x_p), then * one-hot
        d = jnp.sqrt(jnp.maximum(mu2 + x2 - 2.0 * cross, 0.0)) * oh
        hinge = jnp.maximum(d - delta_var, 0.0)
        acc_ref[...] += jnp.sum(hinge * hinge * invn, axis=(0, 1), keepdims=True)

    # ------------- epilogue: distance + regularizer, write loss -------------
    @pl.when(jnp.logical_and(phase == 1, t == last_t))
    def _():
        c_actual = c_ref[b]                                  # actual #instances
        cf = c_actual.astype(jnp.float32)
        means = cm_ref[...]                                  # (C_pad, E)
        mu2 = mu2_ref[...]                                   # (C_pad, 1)

        variance_term = acc_ref[...] / cf                    # (1, 1)

        # pairwise ||mu_i - mu_j||
        gram = lax.dot_general(means, means, (((1,), (1,)), ((), ())),
                               preferred_element_type=jnp.float32)  # (C_pad, C_pad)
        row_i = lax.broadcasted_iota(jnp.int32, (C_pad, C_pad), 0)
        col_i = lax.broadcasted_iota(jnp.int32, (C_pad, C_pad), 1)
        eye = (row_i == col_i).astype(jnp.float32)
        diag_row = jnp.sum(gram * eye, axis=0, keepdims=True)        # (1, C_pad)
        # TODO(synk): clamped sqrt is fine for forward; a VJP would prefer
        # computing the differences directly to avoid the cancellation at 0.
        dpair = jnp.sqrt(jnp.maximum(mu2 + diag_row - 2.0 * gram, 0.0))

        pair_valid = jnp.logical_and(row_i < c_actual,
                                     col_i < c_actual).astype(jnp.float32)
        rep = 2.0 * delta_dist * (1.0 - eye)
        hinged = jnp.maximum(rep - dpair, 0.0)
        hinged = hinged * hinged * pair_valid * (1.0 - eye)
        has_pairs = (c_actual > 1).astype(jnp.float32)
        denom = jnp.maximum(cf * (cf - 1.0), 1.0)
        distance_term = (has_pairs / denom) * jnp.sum(hinged, axis=(0, 1),
                                                      keepdims=True)

        col_valid = (lax.broadcasted_iota(jnp.int32, (C_pad, 1), 0)
                     < c_actual).astype(jnp.float32)
        regularization_term = jnp.sum(jnp.sqrt(mu2) * col_valid,
                                      axis=(0, 1), keepdims=True) / cf

        loss = (alpha * variance_term + beta * distance_term
                + gamma * regularization_term)
        loss_ref[0] = loss


# --------------------------------------------------------------------------
# Forward pass (mirrors AbstractContrastiveLoss.forward)
# --------------------------------------------------------------------------
def contrastive_loss(input_, target_np, *, delta_var=0.5, delta_dist=2.0,
                     alpha=1.0, beta=1.0, gamma=0.001,
                     unlabeled_push_weight=0.0, instance_term_weight=1.0,
                     tile=512):
    input_ = jnp.asarray(input_, dtype=jnp.float32)
    N, E, H, W = input_.shape
    P = H * W
    target_np = np.asarray(target_np)

    # check_consecutive + per-sample instance counts (host side, like the
    # reference's torch.unique + assert).  The kernel itself is batch-wide, so
    # differing C per sample does NOT trigger recompilation.
    counts = []
    for b in range(N):
        labels = np.unique(target_np[b])
        assert labels[0] == 0 and np.all(np.diff(labels) == 1), \
            "labels must be consecutive and start at 0"
        counts.append(int(labels.shape[0]))
    c_per_sample = jnp.asarray(np.asarray(counts, dtype=np.int32))
    C_max = max(counts)
    C_pad = max(8, _round_up(C_max, 8))

    # Spatial tiling: lane-dense tiles, pad tail pixels with label = -1.
    TP = min(_round_up(tile, 128), _round_up(P, 128))
    P_pad = _round_up(P, TP)
    num_tiles = P_pad // TP

    x = input_.reshape(N, E, P)
    if P_pad != P:
        x = jnp.pad(x, ((0, 0), (0, 0), (0, P_pad - P)))
    lbl = target_np.reshape(N, 1, P).astype(np.int32)
    if P_pad != P:
        lbl = np.pad(lbl, ((0, 0), (0, 0), (0, P_pad - P)), constant_values=-1)
    lbl = jnp.asarray(lbl)

    kernel = functools.partial(
        _fused_kernel, delta_var=float(delta_var), delta_dist=float(delta_dist),
        alpha=float(alpha), beta=float(beta), gamma=float(gamma), C_pad=C_pad)

    per_sample = pl.pallas_call(
        kernel,
        out_shape=jax.ShapeDtypeStruct((N, 1, 1), jnp.float32),
        grid_spec=pltpu.PrefetchScalarGridSpec(
            num_scalar_prefetch=1,
            grid=(N, 2, num_tiles),
            in_specs=[pl.BlockSpec((1, E, TP), lambda b, ph, t, c: (b, 0, t)),
                      pl.BlockSpec((1, 1, TP), lambda b, ph, t, c: (b, 0, t))],
            out_specs=pl.BlockSpec((1, 1, 1), lambda b, ph, t, c: (b, 0, 0)),
            scratch_shapes=[pltpu.VMEM((C_pad, E), jnp.float32),
                            pltpu.VMEM((C_pad, 1), jnp.float32),
                            pltpu.VMEM((C_pad, 1), jnp.float32),
                            pltpu.VMEM((1, 1), jnp.float32)]),
        compiler_params=pltpu.CompilerParams(
            dimension_semantics=("parallel", "arbitrary", "arbitrary")),
    )(c_per_sample, x, lbl)

    # TODO(synk): compute_instance_term is abstract in the reference module
    # (raises NotImplementedError); treated as 0.  unlabeled_push_weight
    # defaults to 0.0 -> unlabeled push term disabled.
    del unlabeled_push_weight, instance_term_weight
    return jnp.sum(per_sample) / N


# --------------------------------------------------------------------------
# Pure numpy reference for validation
# --------------------------------------------------------------------------
def _reference_loss(input_np, target_np, delta_var, delta_dist, alpha, beta, gamma):
    N, E, H, W = input_np.shape
    P = H * W
    total = 0.0
    for b in range(N):
        x = input_np[b].reshape(E, P).astype(np.float64)
        labels = np.unique(target_np[b])
        C = labels.shape[0]
        oh = (target_np[b].reshape(P)[None, :] == np.arange(C)[:, None]).astype(np.float64)
        counts = oh.sum(axis=1)                              # (C,)
        means = (oh @ x.T) / counts[:, None]                 # (C, E)
        # variance term
        diff = x[None, :, :] - means[:, :, None]             # (C, E, P)
        d = np.sqrt((diff ** 2).sum(axis=1)) * oh            # (C, P)
        hinge = np.maximum(d - delta_var, 0.0) ** 2
        var = ((hinge.sum(axis=1) / counts).sum()) / C
        # distance term
        dm = np.sqrt(((means[:, None, :] - means[None, :, :]) ** 2).sum(-1))
        rep = 2 * delta_dist * (1 - np.eye(C))
        dist = (np.maximum(rep - dm, 0.0) ** 2).sum() / (C * (C - 1)) if C > 1 else 0.0
        # regularizer
        reg = np.sqrt((means ** 2).sum(axis=1)).sum() / C
        total += alpha * var + beta * dist + gamma * reg
    return total / N


if __name__ == "__main__":
    key = jax.random.PRNGKey(0)
    N, E, H, W = 2, 8, 16, 15   # P = 240 -> exercises spatial tail padding

    input_ = jax.random.normal(key, (N, E, H, W), dtype=jnp.float32)

    # deterministic consecutive instance labels; different C per sample to
    # exercise the padded-cluster masking + scalar-prefetch path.
    yy, xx = np.meshgrid(np.arange(H), np.arange(W), indexing="ij")
    quad = ((yy >= H // 2).astype(np.int32) * 2 + (xx >= W // 2).astype(np.int32))  # 4 instances
    stripes = (xx * 6 // W).astype(np.int32)                                        # 6 instances
    target_np = np.stack([quad, stripes], axis=0).astype(np.int32)

    delta_var, delta_dist = 0.5, 2.0
    alpha, beta, gamma = 1.0, 1.0, 0.001

    loss = contrastive_loss(input_, target_np,
                            delta_var=delta_var, delta_dist=delta_dist,
                            alpha=alpha, beta=beta, gamma=gamma)
    loss = jax.block_until_ready(loss)

    ref = _reference_loss(np.asarray(input_), target_np,
                          delta_var, delta_dist, alpha, beta, gamma)
    np.testing.assert_allclose(float(loss), ref, rtol=1e-3, atol=1e-3)

    print("KERNEL_OK")
</pallas_src>

<mosaic_0001>
module attributes {stable_mosaic.version = 11 : i64} {
  func.func @_fused_kernel(%arg0: i32, %arg1: i32, %arg2: i32, %arg3: memref<2xi32, #tpu.memory_space<smem>>, %arg4: memref<1x8x256xf32, #tpu.memory_space<vmem>>, %arg5: memref<1x1x256xi32, #tpu.memory_space<vmem>>, %arg6: memref<1x1x1xf32, #tpu.memory_space<vmem>>, %arg7: memref<8x8xf32, #tpu.memory_space<vmem>>, %arg8: memref<8x1xf32, #tpu.memory_space<vmem>>, %arg9: memref<8x1xf32, #tpu.memory_space<vmem>>, %arg10: memref<1x1xf32, #tpu.memory_space<vmem>>) attributes {dimension_semantics = [#tpu.dimension_semantics<parallel>, #tpu.dimension_semantics<arbitrary>, #tpu.dimension_semantics<arbitrary>], iteration_bounds = array<i64: 2, 2, 1>, scalar_prefetch = 1 : i64, scratch_operands = 4 : i64, tpu.core_type = #tpu.core_type<tc>, window_params = [{transform_indices = @transform_0, window_bounds = array<i64: 1, 8, 256>}, {transform_indices = @transform_1, window_bounds = array<i64: 1, 1, 256>}, {transform_indices = @transform_2, window_bounds = array<i64: 1, 1, 1>}]} {
    %c0 = arith.constant 0 : index
    %c0_0 = arith.constant 0 : index
    %c0_1 = arith.constant 0 : index
    %0 = vector.load %arg4[%c0, %c0_0, %c0_1] : memref<1x8x256xf32, #tpu.memory_space<vmem>>, vector<1x8x256xf32>
    %1 = vector.shape_cast %0 : vector<1x8x256xf32> to vector<8x256xf32>
    %c0_2 = arith.constant 0 : index
    %c0_3 = arith.constant 0 : index
    %c0_4 = arith.constant 0 : index
    %2 = vector.load %arg5[%c0_2, %c0_3, %c0_4] : memref<1x1x256xi32, #tpu.memory_space<vmem>>, vector<1x1x256xi32>
    %3 = vector.shape_cast %2 : vector<1x1x256xi32> to vector<1x256xi32>
    %4 = tpu.iota {dimensions = array<i32: 0>} : vector<8x256xi32>
    %5 = vector.broadcast %3 : vector<1x256xi32> to vector<8x256xi32>
    %6 = arith.cmpi eq, %4, %5 : vector<8x256xi32>
    %7 = arith.extui %6 : vector<8x256xi1> to vector<8x256xi32>
    %8 = arith.sitofp %7 : vector<8x256xi32> to vector<8x256xf32>
    %c0_i32 = arith.constant 0 : i32
    %9 = arith.cmpi eq, %arg1, %c0_i32 : i32
    %c0_i32_5 = arith.constant 0 : i32
    %10 = arith.cmpi eq, %arg2, %c0_i32_5 : i32
    %11 = arith.andi %9, %10 : i1
    %12 = arith.extui %11 : i1 to i32
    %c0_i32_6 = arith.constant 0 : i32
    %13 = arith.cmpi ne, %12, %c0_i32_6 : i32
    scf.if %13 {
      %cst = arith.constant 0.000000e+00 : f32
      %30 = vector.broadcast %cst : f32 to vector<8x8xf32>
      %c0_16 = arith.constant 0 : index
      %c0_17 = arith.constant 0 : index
      %31 = vector.load %arg7[%c0_16, %c0_17] : memref<8x8xf32, #tpu.memory_space<vmem>>, vector<8x8xf32>
      tpu.vector_store %arg7[%c0_16, %c0_17], %30 {strides = array<i32>} : memref<8x8xf32, #tpu.memory_space<vmem>>, vector<8x8xf32>,
      %cst_18 = arith.constant 0.000000e+00 : f32
      %32 = vector.broadcast %cst_18 : f32 to vector<8x1xf32>
      %c0_19 = arith.constant 0 : index
      %c0_20 = arith.constant 0 : index
      %33 = vector.load %arg8[%c0_19, %c0_20] : memref<8x1xf32, #tpu.memory_space<vmem>>, vector<8x1xf32>
      tpu.vector_store %arg8[%c0_19, %c0_20], %32 {strides = array<i32>} : memref<8x1xf32, #tpu.memory_space<vmem>>, vector<8x1xf32>,
      %cst_21 = arith.constant 0.000000e+00 : f32
      %34 = vector.broadcast %cst_21 : f32 to vector<1x1xf32>
      %c0_22 = arith.constant 0 : index
      %c0_23 = arith.constant 0 : index
      %35 = vector.load %arg10[%c0_22, %c0_23] : memref<1x1xf32, #tpu.memory_space<vmem>>, vector<1x1xf32>
      tpu.vector_store %arg10[%c0_22, %c0_23], %34 {strides = array<i32>} : memref<1x1xf32, #tpu.memory_space<vmem>>, vector<1x1xf32>,
    } else {
    }
    %c0_i32_7 = arith.constant 0 : i32
    %14 = arith.cmpi eq, %arg1, %c0_i32_7 : i32
    %15 = arith.extui %14 : i1 to i32
    %c0_i32_8 = arith.constant 0 : i32
    %16 = arith.cmpi ne, %15, %c0_i32_8 : i32
    scf.if %16 {
      %c0_16 = arith.constant 0 : index
      %c0_17 = arith.constant 0 : index
      %30 = vector.load %arg7[%c0_16, %c0_17] : memref<8x8xf32, #tpu.memory_space<vmem>>, vector<8x8xf32>
      %cst = arith.constant dense<0.000000e+00> : vector<8x8xf32>
      %31 = tpu.matmul %8, %1, %cst {dimension_numbers = #tpu.dot_dimension_numbers<[1], [1], [0], [0], [0, 0, 1, 0], [], []>} : vector<8x256xf32>, vector<8x256xf32>, vector<8x8xf32> -> vector<8x8xf32>
      %32 = arith.addf %30, %31 : vector<8x8xf32>
      %c0_18 = arith.constant 0 : index
      %c0_19 = arith.constant 0 : index
      %33 = vector.load %arg7[%c0_18, %c0_19] : memref<8x8xf32, #tpu.memory_space<vmem>>, vector<8x8xf32>
      tpu.vector_store %arg7[%c0_18, %c0_19], %32 {strides = array<i32>} : memref<8x8xf32, #tpu.memory_space<vmem>>, vector<8x8xf32>,
      %c0_20 = arith.constant 0 : index
      %c0_21 = arith.constant 0 : index
      %34 = vector.load %arg8[%c0_20, %c0_21] : memref<8x1xf32, #tpu.memory_space<vmem>>, vector<8x1xf32>
      %cst_22 = arith.constant dense<0.000000e+00> : vector<8xf32>
      %35 = vector.multi_reduction <add>, %8, %cst_22 [1] : vector<8x256xf32> to vector<8xf32>
      %36 = vector.shape_cast %35 : vector<8xf32> to vector<8x1xf32>
      %37 = arith.addf %34, %36 : vector<8x1xf32>
      %c0_23 = arith.constant 0 : index
      %c0_24 = arith.constant 0 : index
      %38 = vector.load %arg8[%c0_23, %c0_24] : memref<8x1xf32, #tpu.memory_space<vmem>>, vector<8x1xf32>
      tpu.vector_store %arg8[%c0_23, %c0_24], %37 {strides = array<i32>} : memref<8x1xf32, #tpu.memory_space<vmem>>, vector<8x1xf32>,
    } else {
    }
    %c1_i32 = arith.constant 1 : i32
    %17 = arith.cmpi eq, %arg1, %c1_i32 : i32
    %c0_i32_9 = arith.constant 0 : i32
    %18 = arith.cmpi eq, %arg2, %c0_i32_9 : i32
    %19 = arith.andi %17, %18 : i1
    %20 = arith.extui %19 : i1 to i32
    %c0_i32_10 = arith.constant 0 : i32
    %21 = arith.cmpi ne, %20, %c0_i32_10 : i32
    scf.if %21 {
      %c0_16 = arith.constant 0 : index
      %c0_17 = arith.constant 0 : index
      %30 = vector.load %arg8[%c0_16, %c0_17] : memref<8x1xf32, #tpu.memory_space<vmem>>, vector<8x1xf32>
      %cst = arith.constant 1.000000e+00 : f32
      %31 = vector.broadcast %cst : f32 to vector<8x1xf32>
      %32 = arith.maximumf %30, %31 : vector<8x1xf32>
      %cst_18 = arith.constant 1.000000e+00 : f32
      %33 = vector.broadcast %cst_18 : f32 to vector<8x1xf32>
      %34 = arith.divf %33, %32 : vector<8x1xf32>
      %c0_19 = arith.constant 0 : index
      %c0_20 = arith.constant 0 : index
      %35 = vector.load %arg7[%c0_19, %c0_20] : memref<8x8xf32, #tpu.memory_space<vmem>>, vector<8x8xf32>
      %36 = vector.broadcast %34 : vector<8x1xf32> to vector<8x8xf32>
      %37 = arith.mulf %35, %36 : vector<8x8xf32>
      %c0_21 = arith.constant 0 : index
      %c0_22 = arith.constant 0 : index
      %38 = vector.load %arg7[%c0_21, %c0_22] : memref<8x8xf32, #tpu.memory_space<vmem>>, vector<8x8xf32>
      tpu.vector_store %arg7[%c0_21, %c0_22], %37 {strides = array<i32>} : memref<8x8xf32, #tpu.memory_space<vmem>>, vector<8x8xf32>,
      %c0_23 = arith.constant 0 : index
      %c0_24 = arith.constant 0 : index
      %39 = vector.load %arg8[%c0_23, %c0_24] : memref<8x1xf32, #tpu.memory_space<vmem>>, vector<8x1xf32>
      tpu.vector_store %arg8[%c0_23, %c0_24], %34 {strides = array<i32>} : memref<8x1xf32, #tpu.memory_space<vmem>>, vector<8x1xf32>,
      %40 = arith.mulf %37, %37 : vector<8x8xf32>
      %cst_25 = arith.constant dense<0.000000e+00> : vector<8xf32>
      %41 = vector.multi_reduction <add>, %40, %cst_25 [1] : vector<8x8xf32> to vector<8xf32>
      %42 = vector.shape_cast %41 : vector<8xf32> to vector<8x1xf32>
      %c0_26 = arith.constant 0 : index
      %c0_27 = arith.constant 0 : index
      %43 = vector.load %arg9[%c0_26, %c0_27] : memref<8x1xf32, #tpu.memory_space<vmem>>, vector<8x1xf32>
      tpu.vector_store %arg9[%c0_26, %c0_27], %42 {strides = array<i32>} : memref<8x1xf32, #tpu.memory_space<vmem>>, vector<8x1xf32>,
    } else {
    }
    %c1_i32_11 = arith.constant 1 : i32
    %22 = arith.cmpi eq, %arg1, %c1_i32_11 : i32
    %23 = arith.extui %22 : i1 to i32
    %c0_i32_12 = arith.constant 0 : i32
    %24 = arith.cmpi ne, %23, %c0_i32_12 : i32
    scf.if %24 {
      %c0_16 = arith.constant 0 : index
      %c0_17 = arith.constant 0 : index
      %30 = vector.load %arg7[%c0_16, %c0_17] : memref<8x8xf32, #tpu.memory_space<vmem>>, vector<8x8xf32>
      %c0_18 = arith.constant 0 : index
      %c0_19 = arith.constant 0 : index
      %31 = vector.load %arg8[%c0_18, %c0_19] : memref<8x1xf32, #tpu.memory_space<vmem>>, vector<8x1xf32>
      %c0_20 = arith.constant 0 : index
      %c0_21 = arith.constant 0 : index
      %32 = vector.load %arg9[%c0_20, %c0_21] : memref<8x1xf32, #tpu.memory_space<vmem>>, vector<8x1xf32>
      %cst = arith.constant dense<0.000000e+00> : vector<8x256xf32>
      %33 = tpu.matmul %30, %1, %cst {dimension_numbers = #tpu.dot_dimension_numbers<[1], [0], [0], [1], [0, 0, 1, 1], [], []>} : vector<8x8xf32>, vector<8x256xf32>, vector<8x256xf32> -> vector<8x256xf32>
      %34 = arith.mulf %1, %1 : vector<8x256xf32>
      %cst_22 = arith.constant dense<0.000000e+00> : vector<256xf32>
      %35 = vector.multi_reduction <add>, %34, %cst_22 [0] : vector<8x256xf32> to vector<256xf32>
      %36 = vector.shape_cast %35 : vector<256xf32> to vector<1x256xf32>
      %37 = vector.broadcast %32 : vector<8x1xf32> to vector<8x256xf32>
      %38 = vector.broadcast %36 : vector<1x256xf32> to vector<8x256xf32>
      %39 = arith.addf %37, %38 : vector<8x256xf32>
      %cst_23 = arith.constant 2.000000e+00 : f32
      %40 = vector.broadcast %cst_23 : f32 to vector<8x256xf32>
      %41 = arith.mulf %40, %33 : vector<8x256xf32>
      %42 = arith.subf %39, %41 : vector<8x256xf32>
      %cst_24 = arith.constant 0.000000e+00 : f32
      %43 = vector.broadcast %cst_24 : f32 to vector<8x256xf32>
      %44 = arith.maximumf %42, %43 : vector<8x256xf32>
      %45 = math.sqrt %44 : vector<8x256xf32>
      %46 = arith.mulf %45, %8 : vector<8x256xf32>
      %cst_25 = arith.constant 5.000000e-01 : f32
      %47 = vector.broadcast %cst_25 : f32 to vector<8x256xf32>
      %48 = arith.subf %46, %47 : vector<8x256xf32>
      %cst_26 = arith.constant 0.000000e+00 : f32
      %49 = vector.broadcast %cst_26 : f32 to vector<8x256xf32>
      %50 = arith.maximumf %48, %49 : vector<8x256xf32>
      %c0_27 = arith.constant 0 : index
      %c0_28 = arith.constant 0 : index
      %51 = vector.load %arg10[%c0_27, %c0_28] : memref<1x1xf32, #tpu.memory_space<vmem>>, vector<1x1xf32>
      %52 = arith.mulf %50, %50 : vector<8x256xf32>
      %53 = vector.broadcast %31 : vector<8x1xf32> to vector<8x256xf32>
      %54 = arith.mulf %52, %53 : vector<8x256xf32>
      %55 = vector.shape_cast %54 : vector<8x256xf32> to vector<1x8x256xf32>
      %cst_29 = arith.constant dense<0.000000e+00> : vector<1xf32>
      %56 = vector.multi_reduction <add>, %55, %cst_29 [1, 2] : vector<1x8x256xf32> to vector<1xf32>
      %57 = vector.shape_cast %56 : vector<1xf32> to vector<1x1x1xf32>
      %58 = vector.extract %57[0, 0, 0] : f32 from vector<1x1x1xf32>
      %59 = vector.broadcast %58 : f32 to vector<1x1xf32>
      %60 = arith.addf %51, %59 : vector<1x1xf32>
      %c0_30 = arith.constant 0 : index
      %c0_31 = arith.constant 0 : index
      %61 = vector.load %arg10[%c0_30, %c0_31] : memref<1x1xf32, #tpu.memory_space<vmem>>, vector<1x1xf32>
      tpu.vector_store %arg10[%c0_30, %c0_31], %60 {strides = array<i32>} : memref<1x1xf32, #tpu.memory_space<vmem>>, vector<1x1xf32>,
    } else {
    }
    %c1_i32_13 = arith.constant 1 : i32
    %25 = arith.cmpi eq, %arg1, %c1_i32_13 : i32
    %c0_i32_14 = arith.constant 0 : i32
    %26 = arith.cmpi eq, %arg2, %c0_i32_14 : i32
    %27 = arith.andi %25, %26 : i1
    %28 = arith.extui %27 : i1 to i32
    %c0_i32_15 = arith.constant 0 : i32
    %29 = arith.cmpi ne, %28, %c0_i32_15 : i32
    scf.if %29 {
      %30 = arith.index_cast %arg0 : i32 to index
      %31 = memref.load %arg3[%30] : memref<2xi32, #tpu.memory_space<smem>>
      %32 = arith.sitofp %31 : i32 to f32
      %c0_16 = arith.constant 0 : index
      %c0_17 = arith.constant 0 : index
      %33 = vector.load %arg7[%c0_16, %c0_17] : memref<8x8xf32, #tpu.memory_space<vmem>>, vector<8x8xf32>
      %c0_18 = arith.constant 0 : index
      %c0_19 = arith.constant 0 : index
      %34 = vector.load %arg9[%c0_18, %c0_19] : memref<8x1xf32, #tpu.memory_space<vmem>>, vector<8x1xf32>
      %c0_20 = arith.constant 0 : index
      %c0_21 = arith.constant 0 : index
      %35 = vector.load %arg10[%c0_20, %c0_21] : memref<1x1xf32, #tpu.memory_space<vmem>>, vector<1x1xf32>
      %36 = vector.broadcast %32 : f32 to vector<1x1xf32>
      %37 = arith.divf %35, %36 : vector<1x1xf32>
      %cst = arith.constant dense<0.000000e+00> : vector<8x8xf32>
      %38 = tpu.matmul %33, %33, %cst {dimension_numbers = #tpu.dot_dimension_numbers<[1], [1], [0], [0], [0, 0, 1, 0], [], []>} : vector<8x8xf32>, vector<8x8xf32>, vector<8x8xf32> -> vector<8x8xf32>
      %39 = tpu.iota {dimensions = array<i32: 0>} : vector<8x8xi32>
      %40 = tpu.iota {dimensions = array<i32: 1>} : vector<8x8xi32>
      %41 = arith.cmpi eq, %39, %40 : vector<8x8xi32>
      %42 = arith.extui %41 : vector<8x8xi1> to vector<8x8xi32>
      %43 = arith.sitofp %42 : vector<8x8xi32> to vector<8x8xf32>
      %44 = arith.mulf %38, %43 : vector<8x8xf32>
      %cst_22 = arith.constant dense<0.000000e+00> : vector<8xf32>
      %45 = vector.multi_reduction <add>, %44, %cst_22 [0] : vector<8x8xf32> to vector<8xf32>
      %46 = vector.shape_cast %45 : vector<8xf32> to vector<1x8xf32>
      %47 = vector.broadcast %34 : vector<8x1xf32> to vector<8x8xf32>
      %48 = vector.broadcast %46 : vector<1x8xf32> to vector<8x8xf32>
      %49 = arith.addf %47, %48 : vector<8x8xf32>
      %cst_23 = arith.constant 2.000000e+00 : f32
      %50 = vector.broadcast %cst_23 : f32 to vector<8x8xf32>
      %51 = arith.mulf %50, %38 : vector<8x8xf32>
      %52 = arith.subf %49, %51 : vector<8x8xf32>
      %cst_24 = arith.constant 0.000000e+00 : f32
      %53 = vector.broadcast %cst_24 : f32 to vector<8x8xf32>
      %54 = arith.maximumf %52, %53 : vector<8x8xf32>
      %55 = math.sqrt %54 : vector<8x8xf32>
      %56 = vector.broadcast %31 : i32 to vector<8x8xi32>
      %57 = arith.cmpi slt, %39, %56 : vector<8x8xi32>
      %58 = vector.broadcast %31 : i32 to vector<8x8xi32>
      %59 = arith.cmpi slt, %40, %58 : vector<8x8xi32>
      %60 = arith.andi %57, %59 : vector<8x8xi1>
      %61 = arith.extui %60 : vector<8x8xi1> to vector<8x8xi32>
      %62 = arith.sitofp %61 : vector<8x8xi32> to vector<8x8xf32>
      %cst_25 = arith.constant 1.000000e+00 : f32
      %63 = vector.broadcast %cst_25 : f32 to vector<8x8xf32>
      %64 = arith.subf %63, %43 : vector<8x8xf32>
      %cst_26 = arith.constant 4.000000e+00 : f32
      %65 = vector.broadcast %cst_26 : f32 to vector<8x8xf32>
      %66 = arith.mulf %65, %64 : vector<8x8xf32>
      %67 = arith.subf %66, %55 : vector<8x8xf32>
      %cst_27 = arith.constant 0.000000e+00 : f32
      %68 = vector.broadcast %cst_27 : f32 to vector<8x8xf32>
      %69 = arith.maximumf %67, %68 : vector<8x8xf32>
      %70 = arith.mulf %69, %69 : vector<8x8xf32>
      %71 = arith.mulf %70, %62 : vector<8x8xf32>
      %cst_28 = arith.constant 1.000000e+00 : f32
      %72 = vector.broadcast %cst_28 : f32 to vector<8x8xf32>
      %73 = arith.subf %72, %43 : vector<8x8xf32>
      %74 = arith.mulf %71, %73 : vector<8x8xf32>
      %c1_i32_29 = arith.constant 1 : i32
      %75 = arith.cmpi sgt, %31, %c1_i32_29 : i32
      %76 = arith.extui %75 : i1 to i32
      %77 = arith.sitofp %76 : i32 to f32
      %cst_30 = arith.constant 1.000000e+00 : f32
      %78 = arith.subf %32, %cst_30 : f32
      %79 = arith.mulf %32, %78 : f32
      %cst_31 = arith.constant 1.000000e+00 : f32
      %80 = arith.maximumf %79, %cst_31 : f32
      %81 = arith.divf %77, %80 : f32
      %82 = vector.shape_cast %74 : vector<8x8xf32> to vector<1x8x8xf32>
      %cst_32 = arith.constant dense<0.000000e+00> : vector<1xf32>
      %83 = vector.multi_reduction <add>, %82, %cst_32 [1, 2] : vector<1x8x8xf32> to vector<1xf32>
      %84 = vector.shape_cast %83 : vector<1xf32> to vector<1x1x1xf32>
      %85 = vector.extract %84[0, 0, 0] : f32 from vector<1x1x1xf32>
      %86 = vector.broadcast %85 : f32 to vector<1x1xf32>
      %87 = vector.broadcast %81 : f32 to vector<1x1xf32>
      %88 = arith.mulf %87, %86 : vector<1x1xf32>
      %89 = tpu.iota {dimensions = array<i32: 0>} : vector<8x1xi32>
      %90 = vector.broadcast %31 : i32 to vector<8x1xi32>
      %91 = arith.cmpi slt, %89, %90 : vector<8x1xi32>
      %92 = arith.extui %91 : vector<8x1xi1> to vector<8x1xi32>
      %93 = arith.sitofp %92 : vector<8x1xi32> to vector<8x1xf32>
      %94 = math.sqrt %34 : vector<8x1xf32>
      %95 = arith.mulf %94, %93 : vector<8x1xf32>
      %96 = vector.shape_cast %95 : vector<8x1xf32> to vector<1x8x1xf32>
      %cst_33 = arith.constant dense<0.000000e+00> : vector<1xf32>
      %97 = vector.multi_reduction <add>, %96, %cst_33 [1, 2] : vector<1x8x1xf32> to vector<1xf32>
      %98 = vector.shape_cast %97 : vector<1xf32> to vector<1x1x1xf32>
      %99 = vector.extract %98[0, 0, 0] : f32 from vector<1x1x1xf32>
      %100 = vector.broadcast %99 : f32 to vector<1x1xf32>
      %101 = vector.broadcast %32 : f32 to vector<1x1xf32>
      %102 = arith.divf %100, %101 : vector<1x1xf32>
      %cst_34 = arith.constant 1.000000e+00 : f32
      %103 = vector.broadcast %cst_34 : f32 to vector<1x1xf32>
      %104 = arith.mulf %103, %37 : vector<1x1xf32>
      %cst_35 = arith.constant 1.000000e+00 : f32
      %105 = vector.broadcast %cst_35 : f32 to vector<1x1xf32>
      %106 = arith.mulf %105, %88 : vector<1x1xf32>
      %107 = arith.addf %104, %106 : vector<1x1xf32>
      %cst_36 = arith.constant 1.000000e-03 : f32
      %108 = vector.broadcast %cst_36 : f32 to vector<1x1xf32>
      %109 = arith.mulf %108, %102 : vector<1x1xf32>
      %110 = arith.addf %107, %109 : vector<1x1xf32>
      %c0_37 = arith.constant 0 : index
      %c0_38 = arith.constant 0 : index
      %c0_39 = arith.constant 0 : index
      %111 = vector.load %arg6[%c0_37, %c0_38, %c0_39] : memref<1x1x1xf32, #tpu.memory_space<vmem>>, vector<1x1x1xf32>
      %112 = vector.shape_cast %111 : vector<1x1x1xf32> to vector<1x1xf32>
      %113 = vector.shape_cast %110 : vector<1x1xf32> to vector<1x1x1xf32>
      tpu.vector_store %arg6[%c0_37, %c0_38, %c0_39], %113 {strides = array<i32>} : memref<1x1x1xf32, #tpu.memory_space<vmem>>, vector<1x1x1xf32>,
    } else {
    }
    return
  }
  func.func @transform_0(%arg0: i32, %arg1: i32, %arg2: i32, %arg3: memref<2xi32, #tpu.memory_space<smem>>) -> (i32, i32, i32) {
    %c0_i32 = arith.constant 0 : i32
    %c0_i32_0 = arith.constant 0 : i32
    return %arg0, %c0_i32, %arg2 : i32, i32, i32
  }
  func.func @transform_1(%arg0: i32, %arg1: i32, %arg2: i32, %arg3: memref<2xi32, #tpu.memory_space<smem>>) -> (i32, i32, i32) {
    %c0_i32 = arith.constant 0 : i32
    %c0_i32_0 = arith.constant 0 : i32
    return %arg0, %c0_i32, %arg2 : i32, i32, i32
  }
  func.func @transform_2(%arg0: i32, %arg1: i32, %arg2: i32, %arg3: memref<2xi32, #tpu.memory_space<smem>>) -> (i32, i32, i32) {
    %c0_i32 = arith.constant 0 : i32
    %c0_i32_0 = arith.constant 0 : i32
    %c0_i32_1 = arith.constant 0 : i32
    return %arg0, %c0_i32, %c0_i32_0 : i32, i32, i32
  }
}

</mosaic_0001>

<llo_original>
// kernel: tpu_custom_call.1
$region0: #{tpu_custom_call.1}
  #allocation0 [shape = 'u32[]', space=smem, size = 0x4, offset = 0x4, fixed_abs, tag = 'smem constant byte address 0x4 - core index']
  #allocation1 [shape = 'u32[144,128]{1,0:T(1,128)}', space=vmem, size = 0x12000, scoped, tag = 'internal scratch']
  #allocation2 [shape = 'f32[8,8]{1,0:T(8,128)}', space=vmem, size = 0x1000, scoped, tag = 'scratch operand']
  #allocation3 [shape = 'f32[8,1]{1,0:T(8,128)}', space=vmem, size = 0x1000, scoped, tag = 'scratch operand']
  #allocation4 [shape = 'f32[8,1]{1,0:T(8,128)}', space=vmem, size = 0x1000, scoped, tag = 'scratch operand']
  #allocation5 [shape = 'f32[1,1]{1,0:T(1,128)}', space=vmem, size = 0x200, scoped, tag = 'scratch operand']
  #allocation6 [shape = 's32[1]{0}', space=sflag, size = 0x4, scoped, tag = 'scoped memory for tpu_custom_call.1']
  #allocation7 [shape = 'u8[512]{0}', space=smem, size = 0x200, scoped, tag = 'prefetched SMEM operand 0']
  %s0 = inlined_call_operand.hbm [shape: s32[2], index: 0, kind: input, shape index: {}]
  %s1 = inlined_call_operand.hbm [shape: f32[2,8,256], index: 1, kind: input, shape index: {}]
  %s2 = inlined_call_operand.hbm [shape: s32[2,1,256], index: 2, kind: input, shape index: {}]
  %s3 = inlined_call_operand.vmem [shape: f32[2,1,1], index: 3, kind: output, shape index: {}]
  %s4 = sld [smem:[#allocation0]]
  $region69: #{tpu_custom_call.1} parent=0
    _
  %s6 = ssub.s32 1, %s4
  %s7 = scalar_select 0, %s6, %s4
  %9 = dma.hbm_to_smem %s0, 16, [#allocation7], [#allocation6]
  %10 = dma.done [#allocation6], 16
  %11 = sfence
  $region1: #{tpu_custom_call.1} parent=0
    #allocation8 [shape = 'u8[16384]{0}', space=vmem, size = 0x4000, scoped, tag = 'input window, operand 1']
    #allocation9 [shape = 's32[2]{0}', space=sflag, size = 0x8, scoped, tag = 'scoped memory for tpu_custom_call.1']
    #allocation10 [shape = 'u8[2048]{0}', space=vmem, size = 0x800, scoped, tag = 'input window, operand 2']
    #allocation11 [shape = 's32[2]{0}', space=sflag, size = 0x8, scoped, tag = 'scoped memory for tpu_custom_call.1']
    %12 = vsyncpa [#allocation9], 0
    %s13 = scalar_lea.sflag [#allocation9], 1
    %14 = vsyncpa %s13, 0
    %15 = vsyncpa [#allocation11], 0
    %s16 = scalar_lea.sflag [#allocation11], 1
    %17 = vsyncpa %s16, 0
    loop: start=0, step=1, limit=6
    $region2: #{tpu_custom_call.1} parent=1 // loop_pre_header
      _
    $region3: #{tpu_custom_call.1} parent=1 // loop_header
      %s19 = sphi 0, %s23
      %p20 = scmp.ge.s32.totalorder %s19, 6
      %s26 = sphi 0, %s45
      %s27 = sphi 0, %s41
      %s28 = sphi 0, %s37
      %s29 = sphi 0, %s26
      %s30 = sphi 0, %s27
      %s31 = sphi 0, %s28
      %s32 = sphi 0, %s29
      %s33 = sphi 0, %s30
      %s34 = sphi 0, %s31
      %s50 = sphi 0, %s52
      %s53 = sphi 0, %s50
      %s54 = sphi 0, %s53
      %s70 = sphi 0, %s54
      %s78 = sphi 0, %s80
      %s81 = sphi 0, %s78
      %s82 = sphi 0, %s81
      %s98 = sphi 0, %s82
      %s104 = sphi 0, %s106
      %s107 = sphi 0, %s104
      %s108 = sphi 0, %s107
      %s124 = sphi 0, %s108
    $region4: #{tpu_custom_call.1} parent=1 // loop_header_branch
      %22 = sbr.rel (%p20) target = $region8
    $region5: #{tpu_custom_call.1} parent=1 // loop_body
      %s24 = ssub.s32 %s19, 1
      %s25 = ssub.s32 %s19, 2
      %s35 = sadd.s32 1, %s28
      %p36 = scmp.ge.s32.totalorder %s35, 1
      %s37 = scalar_select %p36, 0, %s35
      %s38 = sadd.s32 1, %s27
      %s39 = scalar_select %p36, %s38, %s27
      %p40 = scmp.ge.s32.totalorder %s39, 2
      %s41 = scalar_select %p40, 0, %s39
      %s42 = sadd.s32 1, %s26
      %s43 = scalar_select %p40, %s42, %s26
      %p44 = scmp.ge.s32.totalorder %s43, 2
      %s45 = scalar_select %p44, 0, %s43
      %s46 = ssub.s32 %s26, %s45
      %s47 = ssub.s32 %s28, %s37
      %s48 = sor.u32 %s46, %s47
      %p49 = scmp.eq.s32.totalorder %s48, 0
      %s51 = sadd.s32 %s50, 1
      %s52 = scalar_select %p49, %s50, %s51
      %p55 = pneg %p49
      %p56 = scmp.eq.s32.totalorder %s19, 3
      %p57 = por %p55, %p56
      %p58 = scmp.ne.s32.totalorder %s50, %s53
      %p59 = scmp.eq.s32.totalorder %s19, 0
      %p60 = por %p58, %p59
      %p61 = scmp.ne.s32.totalorder %s50, %s53
      %p62 = scmp.eq.s32.totalorder %s24, 3
      %p63 = por %p61, %p62
      %p64 = scmp.ne.s32.totalorder %s53, %s54
      %p65 = scmp.eq.s32.totalorder %s24, 0
      %p66 = por %p64, %p65
      %p67 = scmp.ne.s32.totalorder %s53, %s54
      %p68 = scmp.eq.s32.totalorder %s25, 3
      %p69 = por %p67, %p68
      %p71 = scmp.ne.s32.totalorder %s54, %s70
      %p72 = scmp.eq.s32.totalorder %s25, 0
      %p73 = por %p71, %p72
      %s74 = ssub.s32 %s26, %s45
      %s75 = ssub.s32 %s28, %s37
      %s76 = sor.u32 %s74, %s75
      %p77 = scmp.eq.s32.totalorder %s76, 0
      %s79 = sadd.s32 %s78, 1
      %s80 = scalar_select %p77, %s78, %s79
      %p83 = pneg %p77
      %p84 = scmp.eq.s32.totalorder %s19, 3
      %p85 = por %p83, %p84
      %p86 = scmp.ne.s32.totalorder %s78, %s81
      %p87 = scmp.eq.s32.totalorder %s19, 0
      %p88 = por %p86, %p87
      %p89 = scmp.ne.s32.totalorder %s78, %s81
      %p90 = scmp.eq.s32.totalorder %s24, 3
      %p91 = por %p89, %p90
      %p92 = scmp.ne.s32.totalorder %s81, %s82
      %p93 = scmp.eq.s32.totalorder %s24, 0
      %p94 = por %p92, %p93
      %p95 = scmp.ne.s32.totalorder %s81, %s82
      %p96 = scmp.eq.s32.totalorder %s25, 3
      %p97 = por %p95, %p96
      %p99 = scmp.ne.s32.totalorder %s82, %s98
      %p100 = scmp.eq.s32.totalorder %s25, 0
      %p101 = por %p99, %p100
      %s102 = ssub.s32 %s26, %s45
      %p103 = scmp.eq.s32.totalorder %s102, 0
      %s105 = sadd.s32 %s104, 1
      %s106 = scalar_select %p103, %s104, %s105
      %p109 = pneg %p103
      %p110 = scmp.eq.s32.totalorder %s19, 3
      %p111 = por %p109, %p110
      %p112 = scmp.ne.s32.totalorder %s104, %s107
      %p113 = scmp.eq.s32.totalorder %s19, 0
      %p114 = por %p112, %p113
      %p115 = scmp.ne.s32.totalorder %s104, %s107
      %p116 = scmp.eq.s32.totalorder %s24, 3
      %p117 = por %p115, %p116
      %p118 = scmp.ne.s32.totalorder %s107, %s108
      %p119 = scmp.eq.s32.totalorder %s24, 0
      %p120 = por %p118, %p119
      %p121 = scmp.ne.s32.totalorder %s107, %s108
      %p122 = scmp.eq.s32.totalorder %s25, 3
      %p123 = por %p121, %p122
      %p125 = scmp.ne.s32.totalorder %s108, %s124
      %p126 = scmp.eq.s32.totalorder %s25, 0
      %p127 = por %p125, %p126
      %p128 = scmp.le.s32.totalorder 1, %s19
      %p129 = scmp.lt.s32.totalorder %s19, 5
      %p130 = pnand %p128, %p129
      %p131 = pneg %p130
      // Predicated region
      $region9: #{tpu_custom_call.1} parent=5 // pred_check
        _
      $region10: #{tpu_custom_call.1} parent=5 // pred_check_branch
        %133 = sbr.rel (%p130) target = $region12
      $region11: #{tpu_custom_call.1} parent=5 // pred_region
        %s134 = ssub.s32 %s19, 1
      $region12: #{tpu_custom_call.1} parent=5 // pred_fallthru
        _
      %p135 = scmp.lt.s32.totalorder %s19, 4
      // Predicated region
      $region13: #{tpu_custom_call.1} parent=5 // pred_check
        %p136 = pneg %p135
      $region14: #{tpu_custom_call.1} parent=5 // pred_check_branch
        %138 = sbr.rel (%p136) target = $region16
      $region15: #{tpu_custom_call.1} parent=5 // pred_region
        // Predicated region
        $region17: #{tpu_custom_call.1} parent=15 // pred_check
          %p139 = pneg %p60
        $region18: #{tpu_custom_call.1} parent=15 // pred_check_branch
          %141 = sbr.rel (%p139) target = $region20
        $region19: #{tpu_custom_call.1} parent=15 // pred_region
          %s142 = sand.u32 %s50, 1
          %s143 = scalar_lea.sflag [#allocation9], %s142
          %s144 = sand.u32 %s50, 1
          %s145 = smul.addr %s144, 16
          %s146 = scalar_lea.vmem [#allocation8], %s145
          %s147 = smul.u32 2, %s28
          %s149 = ssub.s32 256, 256
          %150 = vsyncadd %s143, %s149
          %s151 = smul.addr %s26, 2
          %s152 = sadd.s32 %s147, %s151
          %s153 = smul.addr %s152, 128
          %s154 = scalar_lea.hbm %s1, %s153
          %s156 = sshll.u32 %s146, 4
          %s157 = int_to_ptr.vmem [resolvable:$true] %s156
          %159 = dma.hbm_to_vmem [thread:$0]  %s154, 256, %s157, %s143
        $region20: #{tpu_custom_call.1} parent=15 // pred_fallthru
          _
        // Predicated region
        $region21: #{tpu_custom_call.1} parent=15 // pred_check
          %p160 = pneg %p88
        $region22: #{tpu_custom_call.1} parent=15 // pred_check_branch
          %162 = sbr.rel (%p160) target = $region24
        $region23: #{tpu_custom_call.1} parent=15 // pred_region
          %s163 = sand.u32 %s78, 1
          %s164 = scalar_lea.sflag [#allocation11], %s163
          %s165 = sand.u32 %s78, 1
          %s166 = smul.addr %s165, 2
          %s167 = scalar_lea.vmem [#allocation10], %s166
          %s168 = smul.u32 2, %s28
          %s170 = ssub.s32 32, 32
          %171 = vsyncadd %s164, %s170
          %s172 = smul.addr %s26, 2
          %s173 = sadd.s32 %s168, %s172
          %s174 = smul.addr %s173, 16
          %s175 = scalar_lea.hbm %s2, %s174
          %s177 = sshll.u32 %s167, 4
          %s178 = int_to_ptr.vmem [resolvable:$true] %s177
          %180 = dma.hbm_to_vmem [thread:$0]  %s175, 32, %s178, %s164
        $region24: #{tpu_custom_call.1} parent=15 // pred_fallthru
          _
      $region16: #{tpu_custom_call.1} parent=5 // pred_fallthru
        _
      %p181 = scmp.le.s32.totalorder 1, %s19
      %p182 = scmp.lt.s32.totalorder %s19, 5
      %p183 = pnand %p181, %p182
      %p184 = pneg %p183
      // Predicated region
      $region25: #{tpu_custom_call.1} parent=5 // pred_check
        _
      $region26: #{tpu_custom_call.1} parent=5 // pred_check_branch
        %186 = sbr.rel (%p183) target = $region28
      $region27: #{tpu_custom_call.1} parent=5 // pred_region
        %s187 = ssub.s32 %s19, 1
        %s188 = sand.u32 %s53, 1
        %s189 = scalar_lea.sflag [#allocation9], %s188
        %s190 = sand.u32 %s53, 1
        %s191 = smul.addr %s190, 16
        %s192 = scalar_lea.vmem [#allocation8], %s191
        // Predicated region
        $region29: #{tpu_custom_call.1} parent=27 // pred_check
          %p193 = pneg %p66
        $region30: #{tpu_custom_call.1} parent=27 // pred_check_branch
          %195 = sbr.rel (%p193) target = $region32
        $region31: #{tpu_custom_call.1} parent=27 // pred_region
          %196 = dma.done %s189, 256
        $region32: #{tpu_custom_call.1} parent=27 // pred_fallthru
          _
        %s197 = sand.u32 %s81, 1
        %s198 = scalar_lea.sflag [#allocation11], %s197
        %s199 = sand.u32 %s81, 1
        %s200 = smul.addr %s199, 2
        %s201 = scalar_lea.vmem [#allocation10], %s200
        // Predicated region
        $region33: #{tpu_custom_call.1} parent=27 // pred_check
          %p202 = pneg %p94
        $region34: #{tpu_custom_call.1} parent=27 // pred_check_branch
          %204 = sbr.rel (%p202) target = $region36
        $region35: #{tpu_custom_call.1} parent=27 // pred_region
          %205 = dma.done %s198, 32
        $region36: #{tpu_custom_call.1} parent=27 // pred_fallthru
          _
        %s206 = sand.u32 %s53, 1
        %s207 = scalar_lea.sflag [#allocation9], %s206
        %s208 = sand.u32 %s53, 1
        %s209 = smul.addr %s208, 16
        %s210 = scalar_lea.vmem [#allocation8], %s209
        %p211 = pneg %p66
        %p212 = pneg %p63
        %s213 = sand.u32 %s81, 1
        %s214 = scalar_lea.sflag [#allocation11], %s213
        %s215 = sand.u32 %s81, 1
        %s216 = smul.addr %s215, 2
        %s217 = scalar_lea.vmem [#allocation10], %s216
        %p218 = pneg %p94
        %p219 = pneg %p91
        %p220 = pneg %p120
        %p221 = pneg %p117
        %p222 = scmp.lt.s32.totalorder %s29, 1
        %s223 = scalar_select %p222, %s29, 1
        %s224 = scalar_lea.vmem %s3, %s223
        %s225 = smul.u32 2, %s31
        %s226 = smul.u32 2, %s31
        %p227 = scmp.lt.s32.totalorder %s29, 1
        %s228 = scalar_select %p227, %s29, 1
        %s229 = scalar_lea.vmem %s3, %s228
        %v230 = vld [vmem:[%s192] sm:$0xff]
        %v231 = vld [vmem:[%s192 + $0x8] sm:$0xff]
        %v232 = vld [vmem:[%s201] sm:$0x3]
        %v233 = vlaneseq
        %v234 = vshrl.u32 %v233, 7
        %v235 = vlaneseq
        %v236 = vshrl.u32 %v235, 7
        %v237 = vsub.s32 0, %v236
        %v238 = vrot.slane %v232, %v237
        %v239 = vlaneseq
        %v240 = vshrl.u32 %v239, 7
        %v241 = vsub.s32 1, %v240
        %v242 = vrot.slane %v232, %v241
        %vm243 = vcmp.eq.s32.totalorder %v234, %v238
        %vm244 = vcmp.eq.s32.totalorder %v234, %v242
        %v245 = vsel %vm243, 1, 0
        %v246 = vsel %vm244, 1, 0
        %v247 = vcvt.s32.f32 %v245
        %v248 = vcvt.s32.f32 %v246
        %p249 = scmp.eq.s32.totalorder %s30, 0
        %p250 = scmp.eq.s32.totalorder %s31, 0
        %p251 = pnand %p249, %p250
        %p252 = pneg %p251
        // Predicated region
        $region37: #{tpu_custom_call.1} parent=27 // pred_check
          _
        $region38: #{tpu_custom_call.1} parent=27 // pred_check_branch
          %254 = sbr.rel (%p251) target = $region40
        $region39: #{tpu_custom_call.1} parent=27 // pred_region
          %vm255 = vcmask 64512
          %256 = vst.msk [vmem:[#allocation2] sm:$0xff] %vm255, 0.0
          %vm257 = vcmask 7168
          %258 = vst.msk [vmem:[#allocation3] sm:$0xff] %vm257, 0.0
          %vm259 = vcmask 0
          %260 = vst.msk [vmem:[#allocation5] sm:$0x1] %vm259, 0.0
        $region40: #{tpu_custom_call.1} parent=27 // pred_fallthru
          _
        // Predicated region
        $region41: #{tpu_custom_call.1} parent=27 // pred_check
          %p261 = pneg %p249
        $region42: #{tpu_custom_call.1} parent=27 // pred_check_branch
          %263 = sbr.rel (%p261) target = $region44
        $region43: #{tpu_custom_call.1} parent=27 // pred_region
          %v264 = vld [vmem:[#allocation2] sm:$0xff]
          %265 = vmatprep.subr.mxu0 0.0
          %266 = vmatpush1.xpose.msra.mxu0 0.0
          %267 = vmatprep.subr.mxu0 0.0
          %268 = vmatpush1.xpose.msra.mxu0 0.0
          %269 = vmatprep.subr.mxu0 0.0
          %270 = vmatpush1.xpose.msra.mxu0 0.0
          %271 = vmatprep.subr.mxu0 0.0
          %272 = vmatpush1.xpose.msra.mxu0 0.0
          %273 = vmatprep.subr.mxu0 0.0
          %274 = vmatpush1.xpose.msra.mxu0 0.0
          %275 = vmatprep.subr.mxu0 0.0
          %276 = vmatpush1.xpose.msra.mxu0 0.0
          %277 = vmatprep.subr.mxu0 0.0
          %278 = vmatpush1.xpose.msra.mxu0 0.0
          %279 = vmatprep.subr.mxu0 0.0
          %280 = vmatpush1.xpose.msra.mxu0 0.0
          %281 = vmatprep.subr.mxu0 0.0
          %282 = vmatpush1.xpose.msra.mxu0 0.0
          %283 = vmatprep.subr.mxu0 0.0
          %284 = vmatpush1.xpose.msra.mxu0 0.0
          %285 = vmatprep.subr.mxu0 0.0
          %286 = vmatpush1.xpose.msra.mxu0 0.0
          %287 = vmatprep.subr.mxu0 0.0
          %288 = vmatpush1.xpose.msra.mxu0 0.0
          %289 = vmatprep.subr.mxu0 0.0
          %290 = vmatpush1.xpose.msra.mxu0 0.0
          %291 = vmatprep.subr.mxu0 0.0
          %292 = vmatpush1.xpose.msra.mxu0 0.0
          %293 = vmatprep.subr.mxu0 0.0
          %294 = vmatpush1.xpose.msra.mxu0 0.0
          %295 = vmatprep.subr.mxu0 %v231
          %296 = vmatpush1.xpose.msra.mxu0 %v230
          %297 = vmatprep.subr.mxu0 0.0
          %298 = vmatpush2.xpose.msra.mxu0 0.0
          %299 = vmatprep.subr.mxu0 0.0
          %300 = vmatpush2.xpose.msra.mxu0 0.0
          %301 = vmatprep.subr.mxu0 0.0
          %302 = vmatpush2.xpose.msra.mxu0 0.0
          %303 = vmatprep.subr.mxu0 0.0
          %304 = vmatpush2.xpose.msra.mxu0 0.0
          %305 = vmatprep.subr.mxu0 0.0
          %306 = vmatpush2.xpose.msra.mxu0 0.0
          %307 = vmatprep.subr.mxu0 0.0
          %308 = vmatpush2.xpose.msra.mxu0 0.0
          %309 = vmatprep.subr.mxu0 0.0
          %310 = vmatpush2.xpose.msra.mxu0 0.0
          %311 = vmatprep.subr.mxu0 0.0
          %312 = vmatpush2.xpose.msra.mxu0 0.0
          %313 = vmatprep.subr.mxu0 0.0
          %314 = vmatpush2.xpose.msra.mxu0 0.0
          %315 = vmatprep.subr.mxu0 0.0
          %316 = vmatpush2.xpose.msra.mxu0 0.0
          %317 = vmatprep.subr.mxu0 0.0
          %318 = vmatpush2.xpose.msra.mxu0 0.0
          %319 = vmatprep.subr.mxu0 0.0
          %320 = vmatpush2.xpose.msra.mxu0 0.0
          %321 = vmatprep.subr.mxu0 0.0
          %322 = vmatpush2.xpose.msra.mxu0 0.0
          %323 = vmatprep.subr.mxu0 0.0
          %324 = vmatpush2.xpose.msra.mxu0 0.0
          %325 = vmatprep.subr.mxu0 0.0
          %326 = vmatpush2.xpose.msra.mxu0 0.0
          %327 = vmatprep.subr.mxu0 0.0
          %328 = vmatpush2.xpose.msra.mxu0 0.0
          %329 = vmatprep.mubr.f32.mxu0 %v248
          %330 = vmatmul.mubr.f32.gmra.mxu0 %v247
          %v331 = vpop.f32.mrf.mxu0
          %v332 = vadd.f32 0.0, %v331
          %v333 = vpop.f32.mrf.mxu0
          %334 = vdwg.mxu0
          %v335 = vadd.f32 %v264, %v332
          %vm336 = vcmask 64512
          %337 = vst.msk [vmem:[#allocation2] sm:$0xff] %vm336, %v335
          %v338 = vld [vmem:[#allocation3] sm:$0xff]
          %v339 = vadd.f32 %v247, %v248
          %340 = vadd.xlane.f32.xlu0 %v339
          %v341 = vpop.xlane.xlu0 %340
          %v342 = vadd.f32 %v338, %v341
          %vm343 = vcmask 7168
          %344 = vst.msk [vmem:[#allocation3] sm:$0xff] %vm343, %v342
        $region44: #{tpu_custom_call.1} parent=27 // pred_fallthru
          _
        %p345 = scmp.eq.s32.totalorder %s30, 1
        %p346 = pnand %p345, %p250
        %p347 = pneg %p346
        // Predicated region
        $region45: #{tpu_custom_call.1} parent=27 // pred_check
          _
        $region46: #{tpu_custom_call.1} parent=27 // pred_check_branch
          %349 = sbr.rel (%p346) target = $region48
        $region47: #{tpu_custom_call.1} parent=27 // pred_region
          %v350 = vld [vmem:[#allocation3] sm:$0xff]
          %v351 = vmax.f32 %v350, 1.0
          %v352 = vrcp.pop %v351
          %v353 = vmul.f32 1.0, %v352
          %v354 = vld [vmem:[#allocation2] sm:$0xff]
          %356 = vset.pattern.permute.xlu0 0
          %357 = vperm.xlu0 %356, %v353
          %v358 = vpop.permute.xlu0 %357
          %v360 = vmul.f32 %v354, %v358
          %vm361 = vcmask 64512
          %362 = vst.msk [vmem:[#allocation2] sm:$0xff] %vm361, %v360
          %vm363 = vcmask 7168
          %364 = vst.msk [vmem:[#allocation3] sm:$0xff] %vm363, %v353
          %v365 = vmul.f32 %v360, %v360
          %v366 = vsel %vm361, %v365, 0.0
          %367 = vadd.xlane.f32.xlu0 %v366
          %v368 = vpop.xlane.xlu0 %367
          %369 = vst.msk [vmem:[#allocation4] sm:$0xff] %vm363, %v368
        $region48: #{tpu_custom_call.1} parent=27 // pred_fallthru
          _
        // Predicated region
        $region49: #{tpu_custom_call.1} parent=27 // pred_check
          %p370 = pneg %p345
        $region50: #{tpu_custom_call.1} parent=27 // pred_check_branch
          %372 = sbr.rel (%p370) target = $region52
        $region51: #{tpu_custom_call.1} parent=27 // pred_region
          %v373 = vld [vmem:[#allocation2] sm:$0xff]
          %v374 = vld [vmem:[#allocation3] sm:$0xff]
          %v375 = vld [vmem:[#allocation4] sm:$0xff]
          %vm376 = vcmask 64512
          %v378 = vsel %vm376, %v373, 0
          %380 = vmatprep.subr.mxu0 0.0
          %381 = vmatpush1.msra.mxu0 0.0
          %382 = vmatprep.subr.mxu0 0.0
          %383 = vmatpush1.msra.mxu0 0.0
          %384 = vmatprep.subr.mxu0 0.0
          %385 = vmatpush1.msra.mxu0 0.0
          %386 = vmatprep.subr.mxu0 0.0
          %387 = vmatpush1.msra.mxu0 0.0
          %388 = vmatprep.subr.mxu0 0.0
          %389 = vmatpush1.msra.mxu0 0.0
          %390 = vmatprep.subr.mxu0 0.0
          %391 = vmatpush1.msra.mxu0 0.0
          %392 = vmatprep.subr.mxu0 0.0
          %393 = vmatpush1.msra.mxu0 0.0
          %394 = vmatprep.subr.mxu0 0.0
          %395 = vmatpush1.msra.mxu0 0.0
          %396 = vmatprep.subr.mxu0 0.0
          %397 = vmatpush1.msra.mxu0 0.0
          %398 = vmatprep.subr.mxu0 0.0
          %399 = vmatpush1.msra.mxu0 0.0
          %400 = vmatprep.subr.mxu0 0.0
          %401 = vmatpush1.msra.mxu0 0.0
          %402 = vmatprep.subr.mxu0 0.0
          %403 = vmatpush1.msra.mxu0 0.0
          %404 = vmatprep.subr.mxu0 0.0
          %405 = vmatpush1.msra.mxu0 0.0
          %406 = vmatprep.subr.mxu0 0.0
          %407 = vmatpush1.msra.mxu0 0.0
          %408 = vmatprep.subr.mxu0 0.0
          %409 = vmatpush1.msra.mxu0 0.0
          %410 = vmatprep.subr.mxu0 %v231
          %411 = vmatpush1.msra.mxu0 %v230
          %412 = vmatprep.subr.mxu0 0.0
          %413 = vmatpush2.msra.mxu0 0.0
          %414 = vmatprep.subr.mxu0 0.0
          %415 = vmatpush2.msra.mxu0 0.0
          %416 = vmatprep.subr.mxu0 0.0
          %417 = vmatpush2.msra.mxu0 0.0
          %418 = vmatprep.subr.mxu0 0.0
          %419 = vmatpush2.msra.mxu0 0.0
          %420 = vmatprep.subr.mxu0 0.0
          %421 = vmatpush2.msra.mxu0 0.0
          %422 = vmatprep.subr.mxu0 0.0
          %423 = vmatpush2.msra.mxu0 0.0
          %424 = vmatprep.subr.mxu0 0.0
          %425 = vmatpush2.msra.mxu0 0.0
          %426 = vmatprep.subr.mxu0 0.0
          %427 = vmatpush2.msra.mxu0 0.0
          %428 = vmatprep.subr.mxu0 0.0
          %429 = vmatpush2.msra.mxu0 0.0
          %430 = vmatprep.subr.mxu0 0.0
          %431 = vmatpush2.msra.mxu0 0.0
          %432 = vmatprep.subr.mxu0 0.0
          %433 = vmatpush2.msra.mxu0 0.0
          %434 = vmatprep.subr.mxu0 0.0
          %435 = vmatpush2.msra.mxu0 0.0
          %436 = vmatprep.subr.mxu0 0.0
          %437 = vmatpush2.msra.mxu0 0.0
          %438 = vmatprep.subr.mxu0 0.0
          %439 = vmatpush2.msra.mxu0 0.0
          %440 = vmatprep.subr.mxu0 0.0
          %441 = vmatpush2.msra.mxu0 0.0
          %442 = vmatprep.subr.mxu0 0.0
          %443 = vmatpush2.msra.mxu0 0.0
          %444 = vmatprep.mubr.f32.mxu0 0.0
          %445 = vmatmul.mubr.f32.gmra.mxu0 %v378
          %v446 = vpop.f32.mrf.mxu0
          %v447 = vadd.f32 0.0, %v446
          %v448 = vpop.f32.mrf.mxu0
          %v449 = vadd.f32 0.0, %v448
          %450 = vdwg.mxu0
          %v451 = vmul.f32 %v230, %v230
          %v452 = vmul.f32 %v231, %v231
          %v453 = vrot.slane %v451, 4
          %v454 = vadd.f32 %v451, %v453
          %v455 = vrot.slane %v454, 2
          %v456 = vadd.f32 %v454, %v455
          %v457 = vrot.slane %v456, 1
          %v458 = vadd.f32 %v456, %v457
          %v459 = vrot.slane %v452, 4
          %v460 = vadd.f32 %v452, %v459
          %v461 = vrot.slane %v460, 2
          %v462 = vadd.f32 %v460, %v461
          %v463 = vrot.slane %v462, 1
          %v464 = vadd.f32 %v462, %v463
          %466 = vset.pattern.permute.xlu0 0
          %467 = vperm.xlu0 %466, %v375
          %v468 = vpop.permute.xlu0 %467
          %v470 = vadd.f32 %v468, %v458
          %v471 = vadd.f32 %v468, %v464
          %v472 = vmul.f32 %v447, 2.0
          %v473 = vmul.f32 %v449, 2.0
          %v474 = vsub.f32 %v470, %v472
          %v475 = vsub.f32 %v471, %v473
          %v476 = vmax.f32 %v474, 0.0
          %v477 = vmax.f32 %v475, 0.0
          %v478 = vrsqrt.pop %v476
          %v479 = vmul.f32 %v476, %v478
          %vm480 = vcmp.eq.f32.partialorder %v476, inf
          %v481 = vsel %vm480, %v476, %v479
          %vm482 = vcmp.eq.f32.partialorder %v476, 0.0
          %v483 = vand.u32 %v476, 2147483648
          %v484 = vsel %vm482, %v483, %v481
          %v485 = vrsqrt.pop %v477
          %v486 = vmul.f32 %v477, %v485
          %vm487 = vcmp.eq.f32.partialorder %v477, inf
          %v488 = vsel %vm487, %v477, %v486
          %vm489 = vcmp.eq.f32.partialorder %v477, 0.0
          %v490 = vand.u32 %v477, 2147483648
          %v491 = vsel %vm489, %v490, %v488
          %v492 = vmul.f32 %v484, %v247
          %v493 = vmul.f32 %v491, %v248
          %v494 = vsub.f32 %v492, 0.5
          %v495 = vsub.f32 %v493, 0.5
          %v496 = vmax.f32 %v494, 0.0
          %v497 = vmax.f32 %v495, 0.0
          %v498 = vld [vmem:[#allocation5] sm:$0x1]
          %v499 = vmul.f32 %v496, %v496
          %v500 = vmul.f32 %v497, %v497
          %502 = vset.pattern.permute.xlu0 0
          %503 = vperm.xlu0 %502, %v374
          %v504 = vpop.permute.xlu0 %503
          %v506 = vmul.f32 %v499, %v504
          %v507 = vmul.f32 %v500, %v504
          %v508 = vadd.f32 %v506, %v507
          %509 = vadd.xlane.f32.xlu0 %v508
          %v510 = vpop.xlane.xlu0 %509
          %v511 = vrot.slane %v510, 4
          %v512 = vadd.f32 %v510, %v511
          %v513 = vrot.slane %v512, 2
          %v514 = vadd.f32 %v512, %v513
          %v515 = vrot.slane %v514, 1
          %v516 = vadd.f32 %v514, %v515
          %s517 = vtos %v516
          %v518 = vstv %s517
          %v519 = vadd.f32 %v498, %v518
          %vm520 = vcmask 0
          %521 = vst.msk [vmem:[#allocation5] sm:$0x1] %vm520, %v519
        $region52: #{tpu_custom_call.1} parent=27 // pred_fallthru
          _
        // Predicated region
        $region53: #{tpu_custom_call.1} parent=27 // pred_check
          _
        $region54: #{tpu_custom_call.1} parent=27 // pred_check_branch
          %523 = sbr.rel (%p346) target = $region56
        $region55: #{tpu_custom_call.1} parent=27 // pred_region
          %s524 = sld [smem:[#allocation7 + %s29]]
          %s525 = scvt.s32.f32 %s524
          %v526 = vld [vmem:[#allocation2] sm:$0xff]
          %v527 = vld [vmem:[#allocation4] sm:$0xff]
          %v528 = vld [vmem:[#allocation5] sm:$0x1]
          %v529 = vstv %s525
          %v530 = vrcp.pop %v529
          %v531 = vmul.f32 %v528, %v530
          %vm532 = vcmask 64512
          %v534 = vsel %vm532, %v526, 0
          %536 = vmatprep.subr.mxu0 0.0
          %537 = vmatpush1.xpose.msra.mxu0 0.0
          %538 = vmatprep.subr.mxu0 0.0
          %539 = vmatpush1.xpose.msra.mxu0 0.0
          %540 = vmatprep.subr.mxu0 0.0
          %541 = vmatpush1.xpose.msra.mxu0 0.0
          %542 = vmatprep.subr.mxu0 0.0
          %543 = vmatpush1.xpose.msra.mxu0 0.0
          %544 = vmatprep.subr.mxu0 0.0
          %545 = vmatpush1.xpose.msra.mxu0 0.0
          %546 = vmatprep.subr.mxu0 0.0
          %547 = vmatpush1.xpose.msra.mxu0 0.0
          %548 = vmatprep.subr.mxu0 0.0
          %549 = vmatpush1.xpose.msra.mxu0 0.0
          %550 = vmatprep.subr.mxu0 0.0
          %551 = vmatpush1.xpose.msra.mxu0 0.0
          %552 = vmatprep.subr.mxu0 0.0
          %553 = vmatpush1.xpose.msra.mxu0 0.0
          %554 = vmatprep.subr.mxu0 0.0
          %555 = vmatpush1.xpose.msra.mxu0 0.0
          %556 = vmatprep.subr.mxu0 0.0
          %557 = vmatpush1.xpose.msra.mxu0 0.0
          %558 = vmatprep.subr.mxu0 0.0
          %559 = vmatpush1.xpose.msra.mxu0 0.0
          %560 = vmatprep.subr.mxu0 0.0
          %561 = vmatpush1.xpose.msra.mxu0 0.0
          %562 = vmatprep.subr.mxu0 0.0
          %563 = vmatpush1.xpose.msra.mxu0 0.0
          %564 = vmatprep.subr.mxu0 0.0
          %565 = vmatpush1.xpose.msra.mxu0 0.0
          %566 = vmatprep.subr.mxu0 0.0
          %567 = vmatpush1.xpose.msra.mxu0 %v534
          %568 = vmatprep.subr.mxu0 0.0
          %569 = vmatpush2.xpose.msra.mxu0 0.0
          %570 = vmatprep.subr.mxu0 0.0
          %571 = vmatpush2.xpose.msra.mxu0 0.0
          %572 = vmatprep.subr.mxu0 0.0
          %573 = vmatpush2.xpose.msra.mxu0 0.0
          %574 = vmatprep.subr.mxu0 0.0
          %575 = vmatpush2.xpose.msra.mxu0 0.0
          %576 = vmatprep.subr.mxu0 0.0
          %577 = vmatpush2.xpose.msra.mxu0 0.0
          %578 = vmatprep.subr.mxu0 0.0
          %579 = vmatpush2.xpose.msra.mxu0 0.0
          %580 = vmatprep.subr.mxu0 0.0
          %581 = vmatpush2.xpose.msra.mxu0 0.0
          %582 = vmatprep.subr.mxu0 0.0
          %583 = vmatpush2.xpose.msra.mxu0 0.0
          %584 = vmatprep.subr.mxu0 0.0
          %585 = vmatpush2.xpose.msra.mxu0 0.0
          %586 = vmatprep.subr.mxu0 0.0
          %587 = vmatpush2.xpose.msra.mxu0 0.0
          %588 = vmatprep.subr.mxu0 0.0
          %589 = vmatpush2.xpose.msra.mxu0 0.0
          %590 = vmatprep.subr.mxu0 0.0
          %591 = vmatpush2.xpose.msra.mxu0 0.0
          %592 = vmatprep.subr.mxu0 0.0
          %593 = vmatpush2.xpose.msra.mxu0 0.0
          %594 = vmatprep.subr.mxu0 0.0
          %595 = vmatpush2.xpose.msra.mxu0 0.0
          %596 = vmatprep.subr.mxu0 0.0
          %597 = vmatpush2.xpose.msra.mxu0 0.0
          %598 = vmatprep.subr.mxu0 0.0
          %599 = vmatpush2.xpose.msra.mxu0 0.0
          %600 = vmatprep.mubr.f32.mxu0 0.0
          %601 = vmatmul.mubr.f32.gmra.mxu0 %v534
          %v602 = vpop.f32.mrf.mxu0
          %v603 = vadd.f32 0.0, %v602
          %v604 = vpop.f32.mrf.mxu0
          %605 = vdwg.mxu0
          %v606 = vlaneseq
          %v607 = vand.u32 %v606, 127
          %vm608 = vcmp.eq.s32.totalorder %v234, %v607
          %v609 = vsel %vm608, 1, 0
          %v610 = vcvt.s32.f32 %v609
          %v611 = vmul.f32 %v603, %v610
          %v612 = vsel %vm532, %v611, 0.0
          %v613 = vrot.slane %v612, 4
          %v614 = vadd.f32 %v612, %v613
          %v615 = vrot.slane %v614, 2
          %v616 = vadd.f32 %v614, %v615
          %v617 = vrot.slane %v616, 1
          %v618 = vadd.f32 %v616, %v617
          %620 = vset.pattern.permute.xlu0 0
          %621 = vperm.xlu0 %620, %v527
          %v622 = vpop.permute.xlu0 %621
          %v624 = vadd.f32 %v622, %v618
          %v625 = vmul.f32 %v603, 2.0
          %v626 = vsub.f32 %v624, %v625
          %v627 = vmax.f32 %v626, 0.0
          %v628 = vrsqrt.pop %v627
          %v629 = vmul.f32 %v627, %v628
          %vm630 = vcmp.eq.f32.partialorder %v627, inf
          %v631 = vsel %vm630, %v627, %v629
          %vm632 = vcmp.eq.f32.partialorder %v627, 0.0
          %v633 = vand.u32 %v627, 2147483648
          %v634 = vsel %vm632, %v633, %v631
          %v635 = vstv %s524
          %vm636 = vcmp.lt.s32.totalorder %v234, %v635
          %vm637 = vcmp.lt.s32.totalorder %v607, %v635
          %vm638 = vmand %vm636, %vm637
          %v639 = vsel %vm638, 1, 0
          %v640 = vcvt.s32.f32 %v639
          %v641 = vsub.f32 1.0, %v610
          %v642 = vmul.f32 %v641, 4.0
          %v643 = vsub.f32 %v642, %v634
          %v644 = vmax.f32 %v643, 0.0
          %v645 = vmul.f32 %v644, %v644
          %v646 = vmul.f32 %v645, %v640
          %v647 = vmul.f32 %v646, %v641
          %p648 = scmp.gt.s32.totalorder %s524, 1
          %s649 = scalar_select %p648, 1, 0
          %s650 = scvt.s32.f32 %s649
          %s651 = ssub.f32 %s525, 1.0
          %s652 = smul.f32 %s525, %s651
          %s653 = smax.f32 %s652, 1.0
          %v654 = vstv %s653
          %v655 = vrcp.pop %v654
          %s656 = vtos %v655
          %s657 = smul.f32 %s650, %s656
          %v658 = vsel %vm532, %v647, 0.0
          %659 = vadd.xlane.f32.xlu0 %v658
          %v660 = vpop.xlane.xlu0 %659
          %v661 = vrot.slane %v660, 4
          %v662 = vadd.f32 %v660, %v661
          %v663 = vrot.slane %v662, 2
          %v664 = vadd.f32 %v662, %v663
          %v665 = vrot.slane %v664, 1
          %v666 = vadd.f32 %v664, %v665
          %s667 = vtos %v666
          %v668 = vstv %s667
          %v669 = vstv %s657
          %v670 = vmul.f32 %v669, %v668
          %v671 = vsel %vm636, 1, 0
          %v672 = vcvt.s32.f32 %v671
          %v673 = vrsqrt.pop %v527
          %v674 = vmul.f32 %v527, %v673
          %vm675 = vcmp.eq.f32.partialorder %v527, inf
          %v676 = vsel %vm675, %v527, %v674
          %vm677 = vcmp.eq.f32.partialorder %v527, 0.0
          %v678 = vand.u32 %v527, 2147483648
          %v679 = vsel %vm677, %v678, %v676
          %v680 = vmul.f32 %v679, %v672
          %vm681 = vcmask 7168
          %v682 = vsel %vm681, %v680, 0.0
          %683 = vadd.xlane.f32.xlu0 %v682
          %v684 = vpop.xlane.xlu0 %683
          %v685 = vrot.slane %v684, 4
          %v686 = vadd.f32 %v684, %v685
          %v687 = vrot.slane %v686, 2
          %v688 = vadd.f32 %v686, %v687
          %v689 = vrot.slane %v688, 1
          %v690 = vadd.f32 %v688, %v689
          %s691 = vtos %v690
          %v692 = vstv %s691
          %v693 = vmul.f32 %v692, %v530
          %v694 = vadd.f32 %v531, %v670
          %v695 = vmul.f32 %v693, 0.001
          %v696 = vadd.f32 %v694, %v695
          %vm697 = vcmask 0
          %698 = vst.msk [vmem:[%s229] sm:$0x1] %vm697, %v696
        $region56: #{tpu_custom_call.1} parent=27 // pred_fallthru
          _
        %p699 = scmp.lt.s32.totalorder %s29, 1
        %s700 = scalar_select %p699, %s29, 1
        %s701 = scalar_lea.vmem %s3, %s700
        // Predicated region
        $region57: #{tpu_custom_call.1} parent=27 // pred_check
          %p702 = pneg %p117
        $region58: #{tpu_custom_call.1} parent=27 // pred_check_branch
          %704 = sbr.rel (%p702) target = $region60
        $region59: #{tpu_custom_call.1} parent=27 // pred_region
          _
        $region60: #{tpu_custom_call.1} parent=27 // pred_fallthru
          _
      $region28: #{tpu_custom_call.1} parent=5 // pred_fallthru
        _
      %p705 = scmp.le.s32.totalorder 2, %s19
      // Predicated region
      $region61: #{tpu_custom_call.1} parent=5 // pred_check
        %p706 = pneg %p705
      $region62: #{tpu_custom_call.1} parent=5 // pred_check_branch
        %708 = sbr.rel (%p706) target = $region64
      $region63: #{tpu_custom_call.1} parent=5 // pred_region
        %s709 = ssub.s32 %s19, 2
        // Predicated region
        $region65: #{tpu_custom_call.1} parent=63 // pred_check
          %p710 = pneg %p123
        $region66: #{tpu_custom_call.1} parent=63 // pred_check_branch
          %712 = sbr.rel (%p710) target = $region68
        $region67: #{tpu_custom_call.1} parent=63 // pred_region
          %p713 = scmp.lt.s32.totalorder %s32, 1
          %s714 = scalar_select %p713, %s32, 1
          %s715 = scalar_lea.vmem %s3, %s714
        $region68: #{tpu_custom_call.1} parent=63 // pred_fallthru
          _
      $region64: #{tpu_custom_call.1} parent=5 // pred_fallthru
        _
    $region6: #{tpu_custom_call.1} parent=1 // loop_footer
      %s23 = sadd.s32 1, %s19
    $region7: #{tpu_custom_call.1} parent=1 // loop_footer_branch
      %18 = sbr.rel target = $region3
    $region8: #{tpu_custom_call.1} parent=1 // loop_exit
      _
    %716 = vsyncpa [#allocation9], 1
    %s717 = scalar_lea.sflag [#allocation9], 1
    %718 = vsyncpa %s717, 1
    %719 = vsyncpa [#allocation11], 1
    %s720 = scalar_lea.sflag [#allocation11], 1
    %721 = vsyncpa %s720, 1

</llo_original>
